<compile_context>
chip_gen: v6e
topology: v6e:2x2x1
jax: 0.10.0
libtpu: 0.0.40
codegen_flags: <defaults>
</compile_context>

<pallas_src>
import functools
import math

import jax
import jax.numpy as jnp
from jax import lax
from jax.experimental import pallas as pl
from jax.experimental.pallas import tpu as pltpu

# Scoped-VMEM budget. Tile choices below stay well under this on every
# generation: v5e/v6e have 128 MiB physical VMEM (this could be raised to
# 64-96 MiB there when sweeping larger linear tiles), v7x has 64 MiB per
# TensorCore, so 48 MiB is the safe cross-generation ceiling.
_VMEM_LIMIT_BYTES = 48 * 1024 * 1024


def _round_up(x, m):
    return (x + m - 1) // m * m


def _pick_tile(dim, prefs):
    """Largest preferred tile that evenly divides `dim`, else the full dim."""
    for p in prefs:
        if p <= dim and dim % p == 0:
            return p
    return dim


def _row_tile(m):
    """Row tile + padded row count for the linear kernels.

    Guards the full-extent fallback: an awkward M (e.g. B*S with S=197) is
    padded up to a tile multiple instead of becoming one giant block that
    blows the VMEM budget and kills double-buffering.
    """
    for t in (512, 256, 128):
        if m % t == 0:
            return t, m
    if m <= 512:
        t = _round_up(m, 8)
        return t, t
    return 256, _round_up(m, 256)


def _heads_per_step(num_heads, head_dim):
    """Heads processed per attention grid step.

    Picks the smallest group G (dividing num_heads) whose lane width G*head_dim
    is a multiple of 128 (lane-dense blocks/stores, e.g. G=2 for head_dim=64);
    falls back to all heads (full-E blocks) for tiny embed dims.
    """
    for g in range(1, num_heads + 1):
        if num_heads % g == 0 and (g * head_dim) % 128 == 0:
            return g
    return num_heads


# ----------------------------------------------------------------------------
# Kernel 1: tiled dense / linear layer  y = x @ w + b
#   x: (M, K), w: (K, N) pre-transposed, b: (1, N) -> y: (M, N)
# ----------------------------------------------------------------------------
def _linear_kernel(x_ref, w_ref, b_ref, o_ref, acc_ref):
    @pl.when(pl.program_id(2) == 0)
    def _init():
        acc_ref[...] = jnp.zeros_like(acc_ref)

    # Operands arrive in their storage dtype (f32, or bf16 when mxu_dtype is
    # set — cast once outside the kernel, not per tile); accumulate in f32.
    acc_ref[...] += jnp.dot(x_ref[...], w_ref[...],
                            preferred_element_type=jnp.float32)

    @pl.when(pl.program_id(2) == pl.num_programs(2) - 1)
    def _finalize():
        o_ref[...] = (acc_ref[...] + b_ref[...].astype(jnp.float32)).astype(o_ref.dtype)


def linear(x2d, w, b, *, mxu_dtype=None, out_dtype=None):
    """y = x2d @ w + b.  x2d: (M, K), w: (K, N), b: (N,)."""
    if out_dtype is None:
        out_dtype = x2d.dtype
    if mxu_dtype is not None:
        # Cast activations once here (halves x DMA bytes); weights are already
        # stored in mxu_dtype (astype is a no-op in that case).
        x2d = x2d.astype(mxu_dtype)
        w = w.astype(mxu_dtype)

    M, K = x2d.shape
    K2, N = w.shape
    assert K == K2

    tm, m_pad = _row_tile(M)
    if m_pad != M:
        x2d = jnp.pad(x2d, ((0, m_pad - M), (0, 0)))

    # 256/512 tiles fill the v6e/v7x 256^2 MXU and are 128-aligned for v5e's
    # 4x128^2 MXU; small dims fall back to full-extent blocks.
    tn = _pick_tile(N, (512, 256, 128))
    tk = _pick_tile(K, (512, 256, 128))

    out = pl.pallas_call(
        _linear_kernel,
        out_shape=jax.ShapeDtypeStruct((m_pad, N), out_dtype),
        grid_spec=pltpu.PrefetchScalarGridSpec(
            num_scalar_prefetch=0,
            grid=(m_pad // tm, N // tn, K // tk),
            in_specs=[
                pl.BlockSpec((tm, tk), lambda i, j, k: (i, k)),
                pl.BlockSpec((tk, tn), lambda i, j, k: (k, j)),
                pl.BlockSpec((1, tn), lambda i, j, k: (0, j)),
            ],
            out_specs=pl.BlockSpec((tm, tn), lambda i, j, k: (i, j)),
            scratch_shapes=[pltpu.VMEM((tm, tn), jnp.float32)],
        ),
        compiler_params=pltpu.CompilerParams(
            dimension_semantics=("parallel", "parallel", "arbitrary"),
            vmem_limit_bytes=_VMEM_LIMIT_BYTES,
        ),
    )(x2d, w, b.reshape(1, N))

    if m_pad != M:
        out = out[:M]
    return out


# ----------------------------------------------------------------------------
# Kernel 2: scaled-dot-product attention, G heads of one batch per grid step.
#   q, k, v: (B, S_pad, E); per step a (1, S_pad, G*D) lane slice is DMA'd.
#   -> ctx:   (B, S_pad, E)           heads merged, lane-dense stores
#   -> probs: (B, H, S_pad, S_pad)
# ----------------------------------------------------------------------------
def _attn_kernel(q_ref, k_ref, v_ref, o_ref, p_ref, *,
                 heads_per_step, head_dim, scale, seq_len, seq_pad):
    G, D = heads_per_step, head_dim
    for g in range(G):  # tiny static loop (typically 1-2 heads per step)
        lo = g * D
        q = q_ref[0, :, lo:lo + D]
        k = k_ref[0, :, lo:lo + D]
        v = v_ref[0, :, lo:lo + D]

        # Contract the last dims directly: no explicit k.T, the MXU consumes
        # the transposed operand for free.  Operands may be bf16 (mxu mode);
        # accumulation is always f32.
        scores = lax.dot_general(
            q, k, dimension_numbers=(((1,), (1,)), ((), ())),
            preferred_element_type=jnp.float32)            # (S_pad, S_pad)
        scores = scores * scale

        if seq_pad != seq_len:
            # Mask padded key columns so softmax ignores them.
            kcol = lax.broadcasted_iota(jnp.int32, (seq_pad, seq_pad), 1)
            scores = jnp.where(kcol < seq_len, scores, -1e30)

        m = jnp.max(scores, axis=-1, keepdims=True)
        e = jnp.exp(scores - m)
        probs = e / jnp.sum(e, axis=-1, keepdims=True)      # exact softmax

        # dropout(probs) == probs in eval mode.
        p_ref[0, g] = probs.astype(p_ref.dtype)

        ctx = jnp.dot(probs.astype(v.dtype), v, preferred_element_type=jnp.float32)
        # Head lands at its lane slot of the lane-dense (S, G*D) output block.
        o_ref[0, :, lo:lo + D] = ctx.astype(o_ref.dtype)


def attention(q, k, v, *, num_heads, probs_dtype=None):
    B, S, E = q.shape
    D = E // num_heads
    G = _heads_per_step(num_heads, D)
    W = G * D
    if probs_dtype is None:
        probs_dtype = jnp.float32  # bf16 halves the dominant probs HBM writeback

    # Sublane-align ragged sequence lengths (e.g. ViT's S=197 -> 200); padded
    # key columns are masked inside the kernel.
    s_pad = _round_up(S, 8)
    if s_pad != S:
        pad = ((0, 0), (0, s_pad - S), (0, 0))
        q, k, v = jnp.pad(q, pad), jnp.pad(k, pad), jnp.pad(v, pad)

    kernel = functools.partial(
        _attn_kernel, heads_per_step=G, head_dim=D,
        scale=1.0 / math.sqrt(D), seq_len=S, seq_pad=s_pad)

    head_spec = pl.BlockSpec((1, s_pad, W), lambda b, hg: (b, 0, hg))
    ctx, probs = pl.pallas_call(
        kernel,
        out_shape=(
            jax.ShapeDtypeStruct((B, s_pad, E), jnp.float32),
            jax.ShapeDtypeStruct((B, num_heads, s_pad, s_pad), probs_dtype),
        ),
        grid=(B, num_heads // G),
        in_specs=[head_spec, head_spec, head_spec],
        out_specs=(
            pl.BlockSpec((1, s_pad, W), lambda b, hg: (b, 0, hg)),
            pl.BlockSpec((1, G, s_pad, s_pad), lambda b, hg: (b, hg, 0, 0)),
        ),
        compiler_params=pltpu.CompilerParams(
            # B * H/G independent steps -> both v7x TensorCores get work even
            # for small/odd B, and the pipeline is deep enough to hide DMA.
            dimension_semantics=("parallel", "parallel"),
            vmem_limit_bytes=_VMEM_LIMIT_BYTES,
        ),
    )(q, k, v)

    if s_pad != S:
        ctx = ctx[:, :S, :]
        probs = probs[:, :, :S, :S]
    return ctx, probs


# ----------------------------------------------------------------------------
# Module wrapper
# ----------------------------------------------------------------------------
class MultiHeadSelfAttentionPallas:
    def __init__(self, embed_dim, num_heads, key, dropout=0.1,
                 mxu_dtype=None, probs_dtype=None):
        self.embed_dim = embed_dim
        self.num_heads = num_heads
        self.head_dim = embed_dim // num_heads
        assert self.head_dim * num_heads == embed_dim
        self.dropout = dropout          # identity in eval mode (see TODO above)
        # mxu_dtype=jnp.bfloat16: bf16 MXU operands + f32 accumulation for
        # v5e/v6e/v7x throughput; None preserves full-f32 PyTorch semantics.
        self.mxu_dtype = mxu_dtype
        self.probs_dtype = probs_dtype  # None -> float32 (PyTorch parity)

        keys = jax.random.split(key, 8)
        bound = 1.0 / math.sqrt(embed_dim)

        def u(k, shape):
            return jax.random.uniform(k, shape, jnp.float32, -bound, bound)

        # The fused qkv Linear is stored as three (in, out) column blocks: same
        # math as nn.Linear(E, 3E), but lets attention DMA clean lane-dense
        # per-head-group tiles with no HBM permute and no runtime split copy.
        self.w_q, self.b_q = u(keys[0], (embed_dim, embed_dim)), u(keys[1], (embed_dim,))
        self.w_k, self.b_k = u(keys[2], (embed_dim, embed_dim)), u(keys[3], (embed_dim,))
        self.w_v, self.b_v = u(keys[4], (embed_dim, embed_dim)), u(keys[5], (embed_dim,))
        self.w_proj, self.b_proj = u(keys[6], (embed_dim, embed_dim)), u(keys[7], (embed_dim,))

        if mxu_dtype is not None:
            # Pre-cast weights once: halves weight DMA bytes and the VMEM
            # double-buffer footprint, removes per-tile casts from the K loop.
            self.w_q = self.w_q.astype(mxu_dtype)
            self.w_k = self.w_k.astype(mxu_dtype)
            self.w_v = self.w_v.astype(mxu_dtype)
            self.w_proj = self.w_proj.astype(mxu_dtype)

    def __call__(self, x):
        B, S, E = x.shape
        in_dtype = x.dtype
        x2d = x.reshape(B * S, E)
        # In bf16 mode, keep q/k/v in bf16 so attention DMA and MXU operands
        # are already narrow; context / final output stay f32.
        qkv_dtype = self.mxu_dtype if self.mxu_dtype is not None else in_dtype

        q = linear(x2d, self.w_q, self.b_q, mxu_dtype=self.mxu_dtype, out_dtype=qkv_dtype)
        k = linear(x2d, self.w_k, self.b_k, mxu_dtype=self.mxu_dtype, out_dtype=qkv_dtype)
        v = linear(x2d, self.w_v, self.b_v, mxu_dtype=self.mxu_dtype, out_dtype=qkv_dtype)

        ctx, attention_probs = attention(
            q.reshape(B, S, E), k.reshape(B, S, E), v.reshape(B, S, E),
            num_heads=self.num_heads, probs_dtype=self.probs_dtype)

        out = linear(ctx.reshape(B * S, E), self.w_proj, self.b_proj,
                     mxu_dtype=self.mxu_dtype, out_dtype=in_dtype)
        return out.reshape(B, S, E), attention_probs


# ----------------------------------------------------------------------------
# Pure-JAX reference (correctness sanity check)
# ----------------------------------------------------------------------------
def _reference(module, x):
    B, S, E = x.shape
    H, D = module.num_heads, module.head_dim
    hp = lax.Precision.HIGHEST
    x2 = x.reshape(B * S, E).astype(jnp.float32)

    def proj(w, b):
        y = jnp.dot(x2, w.astype(jnp.float32), precision=hp) + b.astype(jnp.float32)
        return y.reshape(B, S, H, D).transpose(0, 2, 1, 3)

    q, k, v = proj(module.w_q, module.b_q), proj(module.w_k, module.b_k), proj(module.w_v, module.b_v)
    scores = jnp.einsum("bhqd,bhkd->bhqk", q, k, precision=hp) / math.sqrt(D)
    probs = jax.nn.softmax(scores, axis=-1)
    out = jnp.einsum("bhqk,bhkd->bhqd", probs, v, precision=hp)
    out = out.transpose(0, 2, 1, 3).reshape(B * S, E)
    out = jnp.dot(out, module.w_proj.astype(jnp.float32), precision=hp) + module.b_proj.astype(jnp.float32)
    return out.reshape(B, S, E), probs


if __name__ == "__main__":
    key = jax.random.PRNGKey(0)
    k_param, k_x = jax.random.split(key)

    B, S, E, H = 2, 8, 32, 4
    x = jax.random.normal(k_x, (B, S, E), jnp.float32)

    # --- f32 path: PyTorch-parity semantics -------------------------------
    module = MultiHeadSelfAttentionPallas(embed_dim=E, num_heads=H, key=k_param)
    out, attn_probs = module(x)
    jax.block_until_ready((out, attn_probs))
    assert out.shape == (B, S, E)
    assert attn_probs.shape == (B, H, S, S)

    ref_out, ref_probs = _reference(module, x)
    assert jnp.allclose(attn_probs, ref_probs, atol=2e-2, rtol=2e-2)
    assert jnp.allclose(out, ref_out, atol=2e-2, rtol=2e-2)

    # --- bf16-MXU path: v5e/v6e/v7x throughput mode (looser tolerance) ----
    module_bf16 = MultiHeadSelfAttentionPallas(
        embed_dim=E, num_heads=H, key=k_param, mxu_dtype=jnp.bfloat16)
    out_bf, probs_bf = module_bf16(x)
    jax.block_until_ready((out_bf, probs_bf))
    assert out_bf.shape == (B, S, E) and probs_bf.shape == (B, H, S, S)
    assert jnp.allclose(out_bf, ref_out, atol=1.5e-1, rtol=1.5e-1)
    assert jnp.allclose(probs_bf, ref_probs, atol=1.5e-1, rtol=1.5e-1)

    print("KERNEL_OK")
</pallas_src>

<mosaic_0001>
module attributes {stable_mosaic.version = 11 : i64} {
  func.func @_linear_kernel(%arg0: i32, %arg1: i32, %arg2: i32, %arg3: memref<16x32xf32, #tpu.memory_space<vmem>>, %arg4: memref<32x32xf32, #tpu.memory_space<vmem>>, %arg5: memref<1x32xf32, #tpu.memory_space<vmem>>, %arg6: memref<16x32xf32, #tpu.memory_space<vmem>>, %arg7: memref<16x32xf32, #tpu.memory_space<vmem>>) attributes {dimension_semantics = [#tpu.dimension_semantics<parallel>, #tpu.dimension_semantics<parallel>, #tpu.dimension_semantics<arbitrary>], iteration_bounds = array<i64: 1, 1, 1>, scalar_prefetch = 0 : i64, scratch_operands = 1 : i64, tpu.core_type = #tpu.core_type<tc>, window_params = [{transform_indices = @transform_0, window_bounds = array<i64: 16, 32>}, {transform_indices = @transform_1, window_bounds = array<i64: 32, 32>}, {transform_indices = @transform_2, window_bounds = array<i64: 1, 32>}, {transform_indices = @transform_3, window_bounds = array<i64: 16, 32>}]} {
    %c0_i32 = arith.constant 0 : i32
    %0 = arith.cmpi eq, %arg2, %c0_i32 : i32
    %1 = arith.extui %0 : i1 to i32
    %c0_i32_0 = arith.constant 0 : i32
    %2 = arith.cmpi ne, %1, %c0_i32_0 : i32
    scf.if %2 {
      %cst_10 = arith.constant 0.000000e+00 : f32
      %12 = vector.broadcast %cst_10 : f32 to vector<16x32xf32>
      %c0_11 = arith.constant 0 : index
      %c0_12 = arith.constant 0 : index
      %13 = vector.load %arg7[%c0_11, %c0_12] : memref<16x32xf32, #tpu.memory_space<vmem>>, vector<16x32xf32>
      tpu.vector_store %arg7[%c0_11, %c0_12], %12 {strides = array<i32>} : memref<16x32xf32, #tpu.memory_space<vmem>>, vector<16x32xf32>,
    } else {
    }
    %c0 = arith.constant 0 : index
    %c0_1 = arith.constant 0 : index
    %3 = vector.load %arg7[%c0, %c0_1] : memref<16x32xf32, #tpu.memory_space<vmem>>, vector<16x32xf32>
    %c0_2 = arith.constant 0 : index
    %c0_3 = arith.constant 0 : index
    %4 = vector.load %arg3[%c0_2, %c0_3] : memref<16x32xf32, #tpu.memory_space<vmem>>, vector<16x32xf32>
    %c0_4 = arith.constant 0 : index
    %c0_5 = arith.constant 0 : index
    %5 = vector.load %arg4[%c0_4, %c0_5] : memref<32x32xf32, #tpu.memory_space<vmem>>, vector<32x32xf32>
    %cst = arith.constant dense<0.000000e+00> : vector<16x32xf32>
    %6 = tpu.matmul %4, %5, %cst {dimension_numbers = #tpu.dot_dimension_numbers<[1], [0], [0], [1], [0, 0, 1, 1], [], []>} : vector<16x32xf32>, vector<32x32xf32>, vector<16x32xf32> -> vector<16x32xf32>
    %7 = arith.addf %3, %6 : vector<16x32xf32>
    %c0_6 = arith.constant 0 : index
    %c0_7 = arith.constant 0 : index
    %8 = vector.load %arg7[%c0_6, %c0_7] : memref<16x32xf32, #tpu.memory_space<vmem>>, vector<16x32xf32>
    tpu.vector_store %arg7[%c0_6, %c0_7], %7 {strides = array<i32>} : memref<16x32xf32, #tpu.memory_space<vmem>>, vector<16x32xf32>,
    %c0_i32_8 = arith.constant 0 : i32
    %9 = arith.cmpi eq, %arg2, %c0_i32_8 : i32
    %10 = arith.extui %9 : i1 to i32
    %c0_i32_9 = arith.constant 0 : i32
    %11 = arith.cmpi ne, %10, %c0_i32_9 : i32
    scf.if %11 {
      %c0_10 = arith.constant 0 : index
      %c0_11 = arith.constant 0 : index
      %12 = vector.load %arg7[%c0_10, %c0_11] : memref<16x32xf32, #tpu.memory_space<vmem>>, vector<16x32xf32>
      %c0_12 = arith.constant 0 : index
      %c0_13 = arith.constant 0 : index
      %13 = vector.load %arg5[%c0_12, %c0_13] : memref<1x32xf32, #tpu.memory_space<vmem>>, vector<1x32xf32>
      %14 = vector.broadcast %13 : vector<1x32xf32> to vector<16x32xf32>
      %15 = arith.addf %12, %14 : vector<16x32xf32>
      %c0_14 = arith.constant 0 : index
      %c0_15 = arith.constant 0 : index
      %16 = vector.load %arg6[%c0_14, %c0_15] : memref<16x32xf32, #tpu.memory_space<vmem>>, vector<16x32xf32>
      tpu.vector_store %arg6[%c0_14, %c0_15], %15 {strides = array<i32>} : memref<16x32xf32, #tpu.memory_space<vmem>>, vector<16x32xf32>,
    } else {
    }
    return
  }
  func.func @transform_0(%arg0: i32, %arg1: i32, %arg2: i32) -> (i32, i32) {
    %c0_i32 = arith.constant 0 : i32
    return %arg0, %arg2 : i32, i32
  }
  func.func @transform_1(%arg0: i32, %arg1: i32, %arg2: i32) -> (i32, i32) {
    %c0_i32 = arith.constant 0 : i32
    return %arg2, %arg1 : i32, i32
  }
  func.func @transform_2(%arg0: i32, %arg1: i32, %arg2: i32) -> (i32, i32) {
    %c0_i32 = arith.constant 0 : i32
    %c0_i32_0 = arith.constant 0 : i32
    return %c0_i32, %arg1 : i32, i32
  }
  func.func @transform_3(%arg0: i32, %arg1: i32, %arg2: i32) -> (i32, i32) {
    %c0_i32 = arith.constant 0 : i32
    return %arg0, %arg1 : i32, i32
  }
}

</mosaic_0001>

<llo_original>
// kernel: tpu_custom_call.1
$region0: #{tpu_custom_call.1}
  #allocation0 [shape = 'u32[]', space=smem, size = 0x4, offset = 0x4, fixed_abs, tag = 'smem constant byte address 0x4 - core index']
  #allocation1 [shape = 'u32[144,128]{1,0:T(1,128)}', space=vmem, size = 0x12000, scoped, tag = 'internal scratch']
  #allocation2 [shape = 'f32[16,32]{1,0:T(8,128)}', space=vmem, size = 0x2000, scoped, tag = 'scratch operand']
  %s0 = inlined_call_operand.hbm [shape: f32[16,32], index: 0, kind: input, shape index: {}]
  %s1 = inlined_call_operand.hbm [shape: f32[32,32], index: 1, kind: input, shape index: {}]
  %s2 = inlined_call_operand.vmem [shape: f32[1,32], index: 2, kind: input, shape index: {}]
  %s3 = inlined_call_operand.hbm [shape: f32[16,32], index: 3, kind: output, shape index: {}]
  %s4 = sld [smem:[#allocation0]]
  $region38: #{tpu_custom_call.1} parent=0
    _
  %s6 = ssub.s32 1, %s4
  %s7 = scalar_select 0, %s6, %s4
  $region1: #{tpu_custom_call.1} parent=0
    #allocation3 [shape = 'u8[8192]{0}', space=vmem, size = 0x2000, scoped, tag = 'input window, operand 0, single buffered']
    #allocation4 [shape = 's32[1]{0}', space=sflag, size = 0x4, scoped, tag = 'scoped memory for tpu_custom_call.1']
    #allocation5 [shape = 's32[1]{0}', space=sflag, size = 0x4, scoped, tag = 'scoped memory for tpu_custom_call.1']
    #allocation6 [shape = 'u8[16384]{0}', space=vmem, size = 0x4000, scoped, tag = 'input window, operand 1, single buffered']
    #allocation7 [shape = 's32[1]{0}', space=sflag, size = 0x4, scoped, tag = 'scoped memory for tpu_custom_call.1']
    #allocation8 [shape = 'u8[8192]{0}', space=vmem, size = 0x2000, scoped, tag = 'output window, operand 0, single buffered']
    %8 = vsyncpa [#allocation4], 0
    %9 = vsyncpa [#allocation7], 0
    %10 = vsyncpa [#allocation5], 0
    // Predicated region
    $region2: #{tpu_custom_call.1} parent=1 // pred_check
      _
    $region3: #{tpu_custom_call.1} parent=1 // pred_check_branch
      %12 = sbr.rel (0) target = $region5
    $region4: #{tpu_custom_call.1} parent=1 // pred_region
      %s14 = ssub.s32 256, 256
      %15 = vsyncadd [#allocation4], %s14
      %s16 = sshll.u32 [#allocation3], 4
      %s17 = int_to_ptr.vmem [resolvable:$true] %s16
      %22 = dma.hbm_to_vmem [thread:$0]  %s0, 256, %s17, [#allocation4], 128, 128, 8
    $region5: #{tpu_custom_call.1} parent=1 // pred_fallthru
      _
    // Predicated region
    $region6: #{tpu_custom_call.1} parent=1 // pred_check
      _
    $region7: #{tpu_custom_call.1} parent=1 // pred_check_branch
      %24 = sbr.rel (0) target = $region9
    $region8: #{tpu_custom_call.1} parent=1 // pred_region
      %s26 = ssub.s32 512, 512
      %27 = vsyncadd [#allocation7], %s26
      %s28 = sshll.u32 [#allocation6], 4
      %s29 = int_to_ptr.vmem [resolvable:$true] %s28
      %34 = dma.hbm_to_vmem [thread:$0]  %s1, 512, %s29, [#allocation7], 128, 128, 8
    $region9: #{tpu_custom_call.1} parent=1 // pred_fallthru
      _
    // Predicated region
    $region10: #{tpu_custom_call.1} parent=1 // pred_check
      _
    $region11: #{tpu_custom_call.1} parent=1 // pred_check_branch
      %36 = sbr.rel (0) target = $region13
    $region12: #{tpu_custom_call.1} parent=1 // pred_region
      _
    $region13: #{tpu_custom_call.1} parent=1 // pred_fallthru
      _
    // Predicated region
    $region14: #{tpu_custom_call.1} parent=1 // pred_check
      _
    $region15: #{tpu_custom_call.1} parent=1 // pred_check_branch
      %38 = sbr.rel (0) target = $region17
    $region16: #{tpu_custom_call.1} parent=1 // pred_region
      %39 = dma.done [#allocation4], 256
    $region17: #{tpu_custom_call.1} parent=1 // pred_fallthru
      _
    // Predicated region
    $region18: #{tpu_custom_call.1} parent=1 // pred_check
      _
    $region19: #{tpu_custom_call.1} parent=1 // pred_check_branch
      %41 = sbr.rel (0) target = $region21
    $region20: #{tpu_custom_call.1} parent=1 // pred_region
      %42 = dma.done [#allocation7], 512
    $region21: #{tpu_custom_call.1} parent=1 // pred_fallthru
      _
    %p43 = scmp.eq.s32.totalorder 0, 0
    // Predicated region
    $region22: #{tpu_custom_call.1} parent=1 // pred_check
      %p44 = pneg %p43
    $region23: #{tpu_custom_call.1} parent=1 // pred_check_branch
      %46 = sbr.rel (%p44) target = $region25
    $region24: #{tpu_custom_call.1} parent=1 // pred_region
      %vm47 = vcmask 261120
      %48 = vst.msk [vmem:[#allocation2] sm:$0xff] %vm47, 0.0
      %49 = vst.msk [vmem:[#allocation2 + $0x8] sm:$0xff] %vm47, 0.0
    $region25: #{tpu_custom_call.1} parent=1 // pred_fallthru
      _
    %v50 = vld [vmem:[#allocation2] sm:$0xff]
    %v51 = vld [vmem:[#allocation2 + $0x8] sm:$0xff]
    %v52 = vld [vmem:[#allocation3] sm:$0xff]
    %v53 = vld [vmem:[#allocation3 + $0x8] sm:$0xff]
    %v54 = vld [vmem:[#allocation6] sm:$0xff]
    %v55 = vld [vmem:[#allocation6 + $0x8] sm:$0xff]
    %v56 = vld [vmem:[#allocation6 + $0x10] sm:$0xff]
    %v57 = vld [vmem:[#allocation6 + $0x18] sm:$0xff]
    %vm58 = vcmask 261120
    %v60 = vsel %vm58, %v52, 0
    %v63 = vsel %vm58, %v53, 0
    %65 = vmatprep.subr.mxu0 0.0
    %66 = vmatpush1.msra.mxu0 0.0
    %67 = vmatprep.subr.mxu0 0.0
    %68 = vmatpush1.msra.mxu0 0.0
    %69 = vmatprep.subr.mxu0 0.0
    %70 = vmatpush1.msra.mxu0 0.0
    %71 = vmatprep.subr.mxu0 0.0
    %72 = vmatpush1.msra.mxu0 0.0
    %73 = vmatprep.subr.mxu0 0.0
    %74 = vmatpush1.msra.mxu0 0.0
    %75 = vmatprep.subr.mxu0 0.0
    %76 = vmatpush1.msra.mxu0 0.0
    %77 = vmatprep.subr.mxu0 0.0
    %78 = vmatpush1.msra.mxu0 0.0
    %79 = vmatprep.subr.mxu0 0.0
    %80 = vmatpush1.msra.mxu0 0.0
    %81 = vmatprep.subr.mxu0 0.0
    %82 = vmatpush1.msra.mxu0 0.0
    %83 = vmatprep.subr.mxu0 0.0
    %84 = vmatpush1.msra.mxu0 0.0
    %85 = vmatprep.subr.mxu0 0.0
    %86 = vmatpush1.msra.mxu0 0.0
    %87 = vmatprep.subr.mxu0 0.0
    %88 = vmatpush1.msra.mxu0 0.0
    %89 = vmatprep.subr.mxu0 0.0
    %90 = vmatpush1.msra.mxu0 %v57
    %91 = vmatprep.subr.mxu0 0.0
    %92 = vmatpush1.msra.mxu0 %v56
    %93 = vmatprep.subr.mxu0 0.0
    %94 = vmatpush1.msra.mxu0 %v55
    %95 = vmatprep.subr.mxu0 0.0
    %96 = vmatpush1.msra.mxu0 %v54
    %97 = vmatprep.subr.mxu0 0.0
    %98 = vmatpush2.msra.mxu0 0.0
    %99 = vmatprep.subr.mxu0 0.0
    %100 = vmatpush2.msra.mxu0 0.0
    %101 = vmatprep.subr.mxu0 0.0
    %102 = vmatpush2.msra.mxu0 0.0
    %103 = vmatprep.subr.mxu0 0.0
    %104 = vmatpush2.msra.mxu0 0.0
    %105 = vmatprep.subr.mxu0 0.0
    %106 = vmatpush2.msra.mxu0 0.0
    %107 = vmatprep.subr.mxu0 0.0
    %108 = vmatpush2.msra.mxu0 0.0
    %109 = vmatprep.subr.mxu0 0.0
    %110 = vmatpush2.msra.mxu0 0.0
    %111 = vmatprep.subr.mxu0 0.0
    %112 = vmatpush2.msra.mxu0 0.0
    %113 = vmatprep.subr.mxu0 0.0
    %114 = vmatpush2.msra.mxu0 0.0
    %115 = vmatprep.subr.mxu0 0.0
    %116 = vmatpush2.msra.mxu0 0.0
    %117 = vmatprep.subr.mxu0 0.0
    %118 = vmatpush2.msra.mxu0 0.0
    %119 = vmatprep.subr.mxu0 0.0
    %120 = vmatpush2.msra.mxu0 0.0
    %121 = vmatprep.subr.mxu0 0.0
    %122 = vmatpush2.msra.mxu0 0.0
    %123 = vmatprep.subr.mxu0 0.0
    %124 = vmatpush2.msra.mxu0 0.0
    %125 = vmatprep.subr.mxu0 0.0
    %126 = vmatpush2.msra.mxu0 0.0
    %127 = vmatprep.subr.mxu0 0.0
    %128 = vmatpush2.msra.mxu0 0.0
    %129 = vmatprep.mubr.f32.mxu0 0.0
    %130 = vmatmul.mubr.f32.gmra.mxu0 %v60
    %v131 = vpop.f32.mrf.mxu0
    %v132 = vadd.f32 0.0, %v131
    %v133 = vpop.f32.mrf.mxu0
    %134 = vmatprep.mubr.f32.mxu0 0.0
    %135 = vmatmul.mubr.f32.gmra.mxu0 %v63
    %v136 = vpop.f32.mrf.mxu0
    %v137 = vadd.f32 0.0, %v136
    %v138 = vpop.f32.mrf.mxu0
    %139 = vdwg.mxu0
    %v140 = vadd.f32 %v50, %v132
    %v141 = vadd.f32 %v51, %v137
    %142 = vst.msk [vmem:[#allocation2] sm:$0xff] %vm58, %v140
    %143 = vst.msk [vmem:[#allocation2 + $0x8] sm:$0xff] %vm58, %v141
    // Predicated region
    $region26: #{tpu_custom_call.1} parent=1 // pred_check
      %p144 = pneg %p43
    $region27: #{tpu_custom_call.1} parent=1 // pred_check_branch
      %146 = sbr.rel (%p144) target = $region29
    $region28: #{tpu_custom_call.1} parent=1 // pred_region
      %v147 = vld [vmem:[#allocation2] sm:$0xff]
      %v148 = vld [vmem:[#allocation2 + $0x8] sm:$0xff]
      %v149 = vld [vmem:[%s2] sm:$0x1]
      %v151 = vlaneseq
      %v152 = vshrl.u32 %v151, 7
      %v153 = vsub.s32 0, %v152
      %v154 = vrot.slane %v149, %v153
      %v156 = vadd.f32 %v147, %v154
      %v157 = vadd.f32 %v148, %v154
      %158 = vst.msk [vmem:[#allocation8] sm:$0xff] %vm58, %v156
      %159 = vst.msk [vmem:[#allocation8 + $0x8] sm:$0xff] %vm58, %v157
    $region29: #{tpu_custom_call.1} parent=1 // pred_fallthru
      _
    // Predicated region
    $region30: #{tpu_custom_call.1} parent=1 // pred_check
      _
    $region31: #{tpu_custom_call.1} parent=1 // pred_check_branch
      %161 = sbr.rel (0) target = $region33
    $region32: #{tpu_custom_call.1} parent=1 // pred_region
      %s163 = ssub.s32 256, 256
      %164 = vsyncadd [#allocation5], %s163
      %s165 = sshll.u32 [#allocation8], 4
      %s166 = int_to_ptr.vmem [resolvable:$true] %s165
      %171 = dma.vmem_to_hbm [thread:$0]  %s166, 256, %s3, [#allocation5], 128, 128, 8
    $region33: #{tpu_custom_call.1} parent=1 // pred_fallthru
      _
    // Predicated region
    $region34: #{tpu_custom_call.1} parent=1 // pred_check
      _
    $region35: #{tpu_custom_call.1} parent=1 // pred_check_branch
      %173 = sbr.rel (0) target = $region37
    $region36: #{tpu_custom_call.1} parent=1 // pred_region
      %174 = dma.done [#allocation5], 256
    $region37: #{tpu_custom_call.1} parent=1 // pred_fallthru
      _
    %175 = vsyncpa [#allocation4], 1
    %176 = vsyncpa [#allocation7], 1
    %177 = vsyncpa [#allocation5], 1

</llo_original>
